<compile_context>
chip_gen: v6e
topology: v6e:2x2x1
jax: 0.10.0
libtpu: 0.0.40
codegen_flags: <defaults>
</compile_context>

<pallas_src>
import jax
import jax.numpy as jnp
from jax import lax
from jax.experimental import pallas as pl
from jax.experimental.pallas import tpu as pltpu


def _matmul_bias_relu_kernel(w_ref, p_ref, b_ref, o_ref):
    # w_ref : (Cout, Cin*k*k)       bf16 weight slab (full contraction dim)
    # p_ref : (Cin*k*k, COL_BLOCK)  bf16 im2col patches, lane-dense columns
    # b_ref : (Cout, 1)             f32 bias column
    # o_ref : (Cout, COL_BLOCK)     f32 output block (lane-dense)
    acc = jnp.dot(w_ref[...], p_ref[...], preferred_element_type=jnp.float32)
    acc = jnp.maximum(acc + b_ref[...], 0.0)        # fused bias + ReLU epilogue
    o_ref[...] = acc.astype(o_ref.dtype)


def pallas_conv2d_relu(x, weight, bias, *, padding=1,
                       compute_dtype=jnp.bfloat16,
                       max_cols_per_step=32 * 1024):
    """x: (N, Cin, H, W) NCHW; weight: (Cout, Cin, k, k); bias: (Cout,)."""
    n, cin, h, w = x.shape
    cout, cin_w, k, _ = weight.shape
    assert cin == cin_w
    ckk = cin * k * k
    cols = n * h * w

    # ---- wrapper-side layout plumbing (no FLOPs) ---------------------------
    # im2col: (Cin*k*k, N*H*W) patch matrix; contraction ordering matches the
    # OIHW weight reshape (cin-major, then kh, kw).
    x_pad = jnp.pad(x, ((0, 0), (0, 0), (padding, padding), (padding, padding)))
    taps = [x_pad[:, :, kh:kh + h, kw:kw + w]        # each (N, Cin, H, W)
            for kh in range(k) for kw in range(k)]
    patches = jnp.stack(taps, axis=2)                # (N, Cin, k*k, H, W)
    patches = patches.reshape(n, ckk, h * w)         # (N, Cin*k*k, H*W)
    patches = jnp.transpose(patches, (1, 0, 2)).reshape(ckk, cols)
    patches = patches.astype(compute_dtype)

    w_slab = weight.reshape(cout, ckk).astype(compute_dtype)   # (Cout, Cin*k*k)
    b_col = bias.astype(jnp.float32).reshape(cout, 1)          # (Cout, 1)

    # ---- grid: one step at this size; column-blocked for large batches -----
    if cols <= max_cols_per_step:
        col_block = cols
    else:
        per = max(1, max_cols_per_step // (h * w))
        col_block = per * h * w                      # whole (H*W) column groups
    grid = (pl.cdiv(cols, col_block),)

    out_flat = pl.pallas_call(
        _matmul_bias_relu_kernel,
        out_shape=jax.ShapeDtypeStruct((cout, cols), jnp.float32),
        grid_spec=pltpu.PrefetchScalarGridSpec(
            num_scalar_prefetch=0,
            grid=grid,
            in_specs=[
                pl.BlockSpec((cout, ckk), lambda j: (0, 0)),
                pl.BlockSpec((ckk, col_block), lambda j: (0, j)),
                pl.BlockSpec((cout, 1), lambda j: (0, 0)),
            ],
            out_specs=pl.BlockSpec((cout, col_block), lambda j: (0, j)),
        ),
        compiler_params=pltpu.CompilerParams(
            dimension_semantics=("parallel",)),
    )(w_slab, patches, b_col)

    # back to NCHW (layout plumbing only)
    out = out_flat.reshape(cout, n, h, w).transpose(1, 0, 2, 3)
    return out.astype(x.dtype)


class PallasPyTorchModule:
    """Mirror of PyTorchModule: holds the forwarded parameters; forward() calls
    the wrapped module's forward (here: Conv2d(4->8, 3x3, pad=1) + ReLU)."""

    def __init__(self, weight, bias, output_cnt=1):
        assert output_cnt == 1
        # analogous to init_params(): parameters forwarded into module storage
        self._param_inputs = [weight, bias]
        self._name_param_list = [("weight", weight), ("bias", bias)]

    def get_param_by_name(self, name):
        for n, p in self._name_param_list:
            if n == name:
                return p
        raise KeyError(name)

    def forward(self, *inputs):
        (x,) = inputs
        weight, bias = self._param_inputs
        return pallas_conv2d_relu(x, weight, bias, padding=1)

    __call__ = forward


if __name__ == "__main__":
    key = jax.random.PRNGKey(0)
    k_x, k_w, k_b = jax.random.split(key, 3)

    N, CIN, COUT, H, W, K = 2, 4, 8, 16, 16, 3

    x = jax.random.normal(k_x, (N, CIN, H, W), dtype=jnp.float32)
    # deterministic "torch" parameters (synthetic, not a checkpoint load)
    fan_in = CIN * K * K
    weight = jax.random.uniform(k_w, (COUT, CIN, K, K), jnp.float32,
                                minval=-1.0, maxval=1.0) / jnp.sqrt(fan_in)
    bias = jax.random.uniform(k_b, (COUT,), jnp.float32,
                              minval=-0.1, maxval=0.1)

    module = PallasPyTorchModule(weight, bias)
    out = jax.block_until_ready(module(x))

    # Reference: same bf16-rounded operands, f32 accumulation, XLA conv.
    x_r = x.astype(jnp.bfloat16).astype(jnp.float32)
    w_r = weight.astype(jnp.bfloat16).astype(jnp.float32)
    ref = lax.conv_general_dilated(
        x_r, w_r, window_strides=(1, 1), padding="SAME",
        dimension_numbers=("NCHW", "OIHW", "NCHW"),
        precision=lax.Precision.HIGHEST)
    ref = jnp.maximum(ref + bias.reshape(1, COUT, 1, 1), 0.0)

    assert out.shape == (N, COUT, H, W)
    assert jnp.allclose(out, ref, atol=2e-3, rtol=2e-3)

    print("KERNEL_OK")
</pallas_src>

<mosaic_0001>
module attributes {stable_mosaic.version = 11 : i64} {
  func.func @_matmul_bias_relu_kernel(%arg0: i32, %arg1: memref<8x36xbf16, #tpu.memory_space<vmem>>, %arg2: memref<36x512xbf16, #tpu.memory_space<vmem>>, %arg3: memref<8x1xf32, #tpu.memory_space<vmem>>, %arg4: memref<8x512xf32, #tpu.memory_space<vmem>>) attributes {dimension_semantics = [#tpu.dimension_semantics<parallel>], iteration_bounds = array<i64: 1>, scalar_prefetch = 0 : i64, scratch_operands = 0 : i64, tpu.core_type = #tpu.core_type<tc>, window_params = [{pipeline_mode = #tpu.pipeline_mode<synchronous>, transform_indices = @transform_0, window_bounds = array<i64: 8, 36>}, {transform_indices = @transform_1, window_bounds = array<i64: 36, 512>}, {pipeline_mode = #tpu.pipeline_mode<synchronous>, transform_indices = @transform_2, window_bounds = array<i64: 8, 1>}, {transform_indices = @transform_3, window_bounds = array<i64: 8, 512>}]} {
    %c0 = arith.constant 0 : index
    %c0_0 = arith.constant 0 : index
    %0 = vector.load %arg1[%c0, %c0_0] : memref<8x36xbf16, #tpu.memory_space<vmem>>, vector<8x36xbf16>
    %c0_1 = arith.constant 0 : index
    %c0_2 = arith.constant 0 : index
    %1 = vector.load %arg2[%c0_1, %c0_2] : memref<36x512xbf16, #tpu.memory_space<vmem>>, vector<36x512xbf16>
    %cst = arith.constant dense<0.000000e+00> : vector<8x512xf32>
    %2 = tpu.matmul %0, %1, %cst {dimension_numbers = #tpu.dot_dimension_numbers<[1], [0], [0], [1], [0, 0, 1, 1], [], []>} : vector<8x36xbf16>, vector<36x512xbf16>, vector<8x512xf32> -> vector<8x512xf32>
    %c0_3 = arith.constant 0 : index
    %c0_4 = arith.constant 0 : index
    %3 = vector.load %arg3[%c0_3, %c0_4] : memref<8x1xf32, #tpu.memory_space<vmem>>, vector<8x1xf32>
    %4 = vector.broadcast %3 : vector<8x1xf32> to vector<8x512xf32>
    %5 = arith.addf %2, %4 : vector<8x512xf32>
    %cst_5 = arith.constant 0.000000e+00 : f32
    %6 = vector.broadcast %cst_5 : f32 to vector<8x512xf32>
    %7 = arith.maximumf %5, %6 : vector<8x512xf32>
    %c0_6 = arith.constant 0 : index
    %c0_7 = arith.constant 0 : index
    %8 = vector.load %arg4[%c0_6, %c0_7] : memref<8x512xf32, #tpu.memory_space<vmem>>, vector<8x512xf32>
    tpu.vector_store %arg4[%c0_6, %c0_7], %7 {strides = array<i32>} : memref<8x512xf32, #tpu.memory_space<vmem>>, vector<8x512xf32>,
    return
  }
  func.func @transform_0(%arg0: i32) -> (i32, i32) {
    %c0_i32 = arith.constant 0 : i32
    %c0_i32_0 = arith.constant 0 : i32
    %c0_i32_1 = arith.constant 0 : i32
    return %c0_i32, %c0_i32_0 : i32, i32
  }
  func.func @transform_1(%arg0: i32) -> (i32, i32) {
    %c0_i32 = arith.constant 0 : i32
    %c0_i32_0 = arith.constant 0 : i32
    return %c0_i32, %arg0 : i32, i32
  }
  func.func @transform_2(%arg0: i32) -> (i32, i32) {
    %c0_i32 = arith.constant 0 : i32
    %c0_i32_0 = arith.constant 0 : i32
    %c0_i32_1 = arith.constant 0 : i32
    return %c0_i32, %c0_i32_0 : i32, i32
  }
  func.func @transform_3(%arg0: i32) -> (i32, i32) {
    %c0_i32 = arith.constant 0 : i32
    %c0_i32_0 = arith.constant 0 : i32
    return %c0_i32, %arg0 : i32, i32
  }
}

</mosaic_0001>

<llo_original>
// kernel: tpu_custom_call.1
$region0: #{tpu_custom_call.1}
  #allocation0 [shape = 'u32[]', space=smem, size = 0x4, offset = 0x4, fixed_abs, tag = 'smem constant byte address 0x4 - core index']
  #allocation1 [shape = 'u32[144,128]{1,0:T(1,128)}', space=vmem, size = 0x12000, scoped, tag = 'internal scratch']
  %s0 = inlined_call_operand.vmem [shape: bf16[8,36], index: 0, kind: input, shape index: {}]
  %s1 = inlined_call_operand.hbm [shape: bf16[36,512], index: 1, kind: input, shape index: {}]
  %s2 = inlined_call_operand.vmem [shape: f32[8,1], index: 2, kind: input, shape index: {}]
  %s3 = inlined_call_operand.hbm [shape: f32[8,512], index: 3, kind: output, shape index: {}]
  %s4 = sld [smem:[#allocation0]]
  $region26: #{tpu_custom_call.1} parent=0
    _
  %s6 = ssub.s32 1, %s4
  %s7 = scalar_select 0, %s6, %s4
  $region1: #{tpu_custom_call.1} parent=0
    #allocation2 [shape = 'u8[40960]{0}', space=vmem, size = 0xa000, scoped, tag = 'input window, operand 1, single buffered']
    #allocation3 [shape = 's32[1]{0}', space=sflag, size = 0x4, scoped, tag = 'scoped memory for tpu_custom_call.1']
    #allocation4 [shape = 's32[1]{0}', space=sflag, size = 0x4, scoped, tag = 'scoped memory for tpu_custom_call.1']
    #allocation5 [shape = 'u8[16384]{0}', space=vmem, size = 0x4000, scoped, tag = 'output window, operand 0, single buffered']
    %8 = vsyncpa [#allocation3], 0
    %9 = vsyncpa [#allocation4], 0
    // Predicated region
    $region2: #{tpu_custom_call.1} parent=1 // pred_check
      _
    $region3: #{tpu_custom_call.1} parent=1 // pred_check_branch
      %11 = sbr.rel (0) target = $region5
    $region4: #{tpu_custom_call.1} parent=1 // pred_region
      _
    $region5: #{tpu_custom_call.1} parent=1 // pred_fallthru
      _
    // Predicated region
    $region6: #{tpu_custom_call.1} parent=1 // pred_check
      _
    $region7: #{tpu_custom_call.1} parent=1 // pred_check_branch
      %13 = sbr.rel (0) target = $region9
    $region8: #{tpu_custom_call.1} parent=1 // pred_region
      %s15 = ssub.s32 1280, 1280
      %16 = vsyncadd [#allocation3], %s15
      %s17 = sshll.u32 [#allocation2], 4
      %s18 = int_to_ptr.vmem [resolvable:$true] %s17
      %23 = dma.hbm_to_vmem [thread:$0]  %s1, 1280, %s18, [#allocation3], 256, 256, 16
    $region9: #{tpu_custom_call.1} parent=1 // pred_fallthru
      _
    // Predicated region
    $region10: #{tpu_custom_call.1} parent=1 // pred_check
      _
    $region11: #{tpu_custom_call.1} parent=1 // pred_check_branch
      %25 = sbr.rel (0) target = $region13
    $region12: #{tpu_custom_call.1} parent=1 // pred_region
      _
    $region13: #{tpu_custom_call.1} parent=1 // pred_fallthru
      _
    // Predicated region
    $region14: #{tpu_custom_call.1} parent=1 // pred_check
      _
    $region15: #{tpu_custom_call.1} parent=1 // pred_check_branch
      %27 = sbr.rel (0) target = $region17
    $region16: #{tpu_custom_call.1} parent=1 // pred_region
      %28 = dma.done [#allocation3], 1280
    $region17: #{tpu_custom_call.1} parent=1 // pred_fallthru
      _
    %v30 = vld [vmem:[%s0] sm:$0xf]
    %v31 = vld [vmem:[#allocation2] sm:$0xff]
    %v32 = vld [vmem:[#allocation2 + $0x8] sm:$0xff]
    %v33 = vld [vmem:[#allocation2 + $0x10] sm:$0xff]
    %v34 = vld [vmem:[#allocation2 + $0x18] sm:$0xff]
    %v35 = vld [vmem:[#allocation2 + $0x20] sm:$0xff]
    %v36 = vld [vmem:[#allocation2 + $0x28] sm:$0xff]
    %v37 = vld [vmem:[#allocation2 + $0x30] sm:$0xff]
    %v38 = vld [vmem:[#allocation2 + $0x38] sm:$0xff]
    %v39 = vld [vmem:[#allocation2 + $0x40] sm:$0x33]
    %v40 = vld [vmem:[#allocation2 + $0x48] sm:$0x33]
    %v41 = vld [vmem:[%s2] sm:$0xff]
    %43 = vset.pattern.permute.xlu0 0
    %44 = vperm.xlu0 %43, %v41
    %v45 = vpop.permute.xlu0 %44
    %v57 = vunpack.c.l.b16 %v31
    %v58 = vunpack.c.h.b16 %v31
    %v59 = vunpack.c.l.b16 %v32
    %v60 = vunpack.c.h.b16 %v32
    %v61 = vunpack.c.l.b16 %v33
    %v62 = vunpack.c.h.b16 %v33
    %v63 = vunpack.c.l.b16 %v34
    %v64 = vunpack.c.h.b16 %v34
    %v65 = vunpack.c.l.b16 %v35
    %v66 = vunpack.c.h.b16 %v35
    %v67 = vunpack.c.l.b16 %v36
    %v68 = vunpack.c.h.b16 %v36
    %v69 = vunpack.c.l.b16 %v37
    %v70 = vunpack.c.h.b16 %v37
    %v71 = vunpack.c.l.b16 %v38
    %v72 = vunpack.c.h.b16 %v38
    %v73 = vunpack.c.l.b16 %v39
    %v74 = vunpack.c.h.b16 %v39
    %v75 = vunpack.c.l.b16 %v40
    %v76 = vunpack.c.h.b16 %v40
    %v77 = vpack.c.b16 %v61, %v57
    %v78 = vpack.c.b16 %v62, %v58
    %v79 = vpack.c.b16 %v63, %v59
    %v80 = vpack.c.b16 %v64, %v60
    %v81 = vpack.c.b16 %v69, %v65
    %v82 = vpack.c.b16 %v70, %v66
    %v83 = vpack.c.b16 %v71, %v67
    %v84 = vpack.c.b16 %v72, %v68
    %v85 = vpack.c.b16 %v73, %v73
    %v86 = vpack.c.b16 %v74, %v74
    %v87 = vpack.c.b16 %v75, %v75
    %v88 = vpack.c.b16 %v76, %v76
    %vm97 = vcmask 293888
    %v99 = vsel %vm97, %v30, 0
    %vm101 = vcmask 1041408
    %v103 = vsel %vm101, %v85, 0
    %v106 = vsel %vm101, %v86, 0
    %v109 = vsel %vm101, %v87, 0
    %v112 = vsel %vm101, %v88, 0
    %114 = vmatprep.subr.bf16.mxu0 0
    %115 = vmatpush1.bf16.msra.mxu0 0
    %116 = vmatprep.subr.bf16.mxu0 0
    %117 = vmatpush1.bf16.msra.mxu0 0
    %118 = vmatprep.subr.bf16.mxu0 0
    %119 = vmatpush1.bf16.msra.mxu0 0
    %120 = vmatprep.subr.bf16.mxu0 0
    %121 = vmatpush1.bf16.msra.mxu0 0
    %122 = vmatprep.subr.bf16.mxu0 0
    %123 = vmatpush1.bf16.msra.mxu0 0
    %124 = vmatprep.subr.bf16.mxu0 %v106
    %125 = vmatpush1.bf16.msra.mxu0 %v103
    %126 = vmatprep.subr.bf16.mxu0 %v82
    %127 = vmatpush1.bf16.msra.mxu0 %v81
    %128 = vmatprep.subr.bf16.mxu0 %v78
    %129 = vmatpush1.bf16.msra.mxu0 %v77
    %130 = vmatprep.subr.bf16.mxu0 0
    %131 = vmatpush2.bf16.msra.mxu0 0
    %132 = vmatprep.subr.bf16.mxu0 0
    %133 = vmatpush2.bf16.msra.mxu0 0
    %134 = vmatprep.subr.bf16.mxu0 0
    %135 = vmatpush2.bf16.msra.mxu0 0
    %136 = vmatprep.subr.bf16.mxu0 0
    %137 = vmatpush2.bf16.msra.mxu0 0
    %138 = vmatprep.subr.bf16.mxu0 0
    %139 = vmatpush2.bf16.msra.mxu0 0
    %140 = vmatprep.subr.bf16.mxu0 0
    %141 = vmatpush2.bf16.msra.mxu0 0
    %142 = vmatprep.subr.bf16.mxu0 0
    %143 = vmatpush2.bf16.msra.mxu0 0
    %144 = vmatprep.subr.bf16.mxu0 0
    %145 = vmatpush2.bf16.msra.mxu0 0
    %146 = vmatprep.mubr.bf16.mxu0 0
    %147 = vmatmul.mubr.bf16.gmra.mxu0 %v99
    %v148 = vpop.f32.mrf.mxu0
    %v149 = vadd.f32 %v45, %v148
    %v150 = vpop.f32.mrf.mxu0
    %v151 = vadd.f32 %v45, %v150
    %v152 = vpop.f32.mrf.mxu0
    %v153 = vpop.f32.mrf.mxu0
    %154 = vdwg.mxu0
    %155 = vmatprep.subr.bf16.mxu0 0
    %156 = vmatpush1.bf16.msra.mxu0 0
    %157 = vmatprep.subr.bf16.mxu0 0
    %158 = vmatpush1.bf16.msra.mxu0 0
    %159 = vmatprep.subr.bf16.mxu0 0
    %160 = vmatpush1.bf16.msra.mxu0 0
    %161 = vmatprep.subr.bf16.mxu0 0
    %162 = vmatpush1.bf16.msra.mxu0 0
    %163 = vmatprep.subr.bf16.mxu0 0
    %164 = vmatpush1.bf16.msra.mxu0 0
    %165 = vmatprep.subr.bf16.mxu0 %v112
    %166 = vmatpush1.bf16.msra.mxu0 %v109
    %167 = vmatprep.subr.bf16.mxu0 %v84
    %168 = vmatpush1.bf16.msra.mxu0 %v83
    %169 = vmatprep.subr.bf16.mxu0 %v80
    %170 = vmatpush1.bf16.msra.mxu0 %v79
    %171 = vmatprep.subr.bf16.mxu0 0
    %172 = vmatpush2.bf16.msra.mxu0 0
    %173 = vmatprep.subr.bf16.mxu0 0
    %174 = vmatpush2.bf16.msra.mxu0 0
    %175 = vmatprep.subr.bf16.mxu0 0
    %176 = vmatpush2.bf16.msra.mxu0 0
    %177 = vmatprep.subr.bf16.mxu0 0
    %178 = vmatpush2.bf16.msra.mxu0 0
    %179 = vmatprep.subr.bf16.mxu0 0
    %180 = vmatpush2.bf16.msra.mxu0 0
    %181 = vmatprep.subr.bf16.mxu0 0
    %182 = vmatpush2.bf16.msra.mxu0 0
    %183 = vmatprep.subr.bf16.mxu0 0
    %184 = vmatpush2.bf16.msra.mxu0 0
    %185 = vmatprep.subr.bf16.mxu0 0
    %186 = vmatpush2.bf16.msra.mxu0 0
    %187 = vmatprep.mubr.bf16.mxu0 0
    %188 = vmatmul.mubr.bf16.gmra.mxu0 %v99
    %v189 = vpop.f32.mrf.mxu0
    %v190 = vadd.f32 %v45, %v189
    %v191 = vpop.f32.mrf.mxu0
    %v192 = vadd.f32 %v45, %v191
    %v193 = vpop.f32.mrf.mxu0
    %v194 = vpop.f32.mrf.mxu0
    %195 = vdwg.mxu0
    %v196 = vmax.f32 %v149, 0.0
    %v197 = vmax.f32 %v151, 0.0
    %v198 = vmax.f32 %v190, 0.0
    %v199 = vmax.f32 %v192, 0.0
    %200 = vst [vmem:[#allocation5] sm:$0xff] %v196
    %201 = vst [vmem:[#allocation5 + $0x8] sm:$0xff] %v197
    %202 = vst [vmem:[#allocation5 + $0x10] sm:$0xff] %v198
    %203 = vst [vmem:[#allocation5 + $0x18] sm:$0xff] %v199
    // Predicated region
    $region18: #{tpu_custom_call.1} parent=1 // pred_check
      _
    $region19: #{tpu_custom_call.1} parent=1 // pred_check_branch
      %205 = sbr.rel (0) target = $region21
    $region20: #{tpu_custom_call.1} parent=1 // pred_region
      %s207 = ssub.s32 512, 512
      %208 = vsyncadd [#allocation4], %s207
      %s210 = sshll.u32 [#allocation5], 4
      %s211 = int_to_ptr.vmem [resolvable:$true] %s210
      %213 = dma.vmem_to_hbm [thread:$0]  %s211, 512, %s3, [#allocation4]
    $region21: #{tpu_custom_call.1} parent=1 // pred_fallthru
      _
    // Predicated region
    $region22: #{tpu_custom_call.1} parent=1 // pred_check
      _
    $region23: #{tpu_custom_call.1} parent=1 // pred_check_branch
      %215 = sbr.rel (0) target = $region25
    $region24: #{tpu_custom_call.1} parent=1 // pred_region
      %216 = dma.done [#allocation4], 512
    $region25: #{tpu_custom_call.1} parent=1 // pred_fallthru
      _
    %217 = vsyncpa [#allocation3], 1
    %218 = vsyncpa [#allocation4], 1

</llo_original>
